<compile_context>
chip_gen: v7x
topology: tpu7x:2x2x1
jax: 0.10.0
libtpu: 0.0.40
codegen_flags: <defaults>
</compile_context>

<pallas_src>
import jax
import jax.numpy as jnp
import numpy as np
from jax.experimental import pallas as pl
from jax.experimental.pallas import tpu as pltpu


def hgnncam_kernel(p_ref, w_ref, b_ref, o_ref):
    """One fused row-block of the shared conv on both halves + delta.

    p_ref : (1, 1, 2*TM, K) bf16  im2col patches; rows [0,TM) = inverted,
                                  rows [TM,2*TM) = manipulated
    w_ref : (K, C)          bf16  shared conv weight, resident across grid
    b_ref : (1, C)          f32   shared conv bias
    o_ref : (1, TM, C)      f32   feat_delta rows for this block
    """
    tm = o_ref.shape[1]
    x = p_ref[0, 0]                                           # (2*TM, K) bf16
    # Single fat MXU matmul for both image halves, f32 accumulation.
    y = jnp.dot(x, w_ref[...], preferred_element_type=jnp.float32)  # (2*TM, C)
    # Shared bias + ReLU epilogue in f32.
    y = jnp.maximum(y + b_ref[...], 0.0)
    # feat_delta = shared(manipulated) - shared(inverted); sublane-aligned split.
    o_ref[0] = y[tm:, :] - y[:tm, :]


def hgnncam_forward(image_nchw, w, b, *, tm=128):
    """image_nchw: (B, 6, H, W) f32 -> feat_delta (B, C_out, H, W) f32."""
    B, C6, H, W = image_nchw.shape
    assert C6 == 6
    KH, KW, CIN, C_out = w.shape
    assert (KH, KW, CIN) == (3, 3, 3)
    K = KH * KW * CIN                       # 27

    M = H * W
    tm = min(tm, M)
    assert M % tm == 0, "H*W must be divisible by the row-tile size"
    nblk = M // tm

    x = jnp.transpose(image_nchw, (0, 2, 3, 1))               # NCHW -> NHWC
    inverted = x[..., 0:3]
    manipulated = x[..., 3:6]

    def im2col(xs):
        # (B, H, W, 3) -> (B, nblk, tm, 27): 3x3 'SAME' taps on the lane axis.
        xp = jnp.pad(xs, ((0, 0), (1, 1), (1, 1), (0, 0)))
        cols = [xp[:, kh:kh + H, kw:kw + W, :]
                for kh in range(KH) for kw in range(KW)]       # kh-major, kw, cin
        patches = jnp.concatenate(cols, axis=-1)               # (B, H, W, 27)
        return patches.reshape(B, nblk, tm, K)

    p_inv = im2col(inverted)
    p_man = im2col(manipulated)
    # Per row-block: tm inverted rows, then tm manipulated rows -> single matmul.
    patches = jnp.concatenate([p_inv, p_man], axis=2)          # (B, nblk, 2*tm, 27)
    patches = patches.astype(jnp.bfloat16)

    w2 = w.reshape(K, C_out).astype(jnp.bfloat16)              # (27, C_out) resident RHS
    b2 = b.reshape(1, C_out).astype(jnp.float32)

    out = pl.pallas_call(
        hgnncam_kernel,
        out_shape=jax.ShapeDtypeStruct((B, M, C_out), jnp.float32),
        grid_spec=pltpu.PrefetchScalarGridSpec(
            num_scalar_prefetch=0,
            grid=(B, nblk),
            in_specs=[
                pl.BlockSpec((1, 1, 2 * tm, K), lambda bb, mm: (bb, mm, 0, 0)),
                pl.BlockSpec((K, C_out), lambda bb, mm: (0, 0)),
                pl.BlockSpec((1, C_out), lambda bb, mm: (0, 0)),
            ],
            out_specs=pl.BlockSpec((1, tm, C_out), lambda bb, mm: (bb, mm, 0)),
        ),
        compiler_params=pltpu.CompilerParams(
            dimension_semantics=("parallel", "parallel")),
    )(patches, w2, b2)

    out = out.reshape(B, H, W, C_out)
    return jnp.transpose(out, (0, 3, 1, 2))                    # NHWC -> NCHW


def hgnncam_forward_ref(image_nchw, w, b):
    """Pure-JAX reference of the same simplified forward (bf16 conv operands,
    f32 accumulation / epilogue — matches kernel precision)."""
    x = jnp.transpose(image_nchw, (0, 2, 3, 1))
    x = x.astype(jnp.bfloat16).astype(jnp.float32)
    wf = w.astype(jnp.bfloat16).astype(jnp.float32)

    def shared(xs):
        y = jax.lax.conv_general_dilated(
            xs, wf, window_strides=(1, 1), padding="SAME",
            dimension_numbers=("NHWC", "HWIO", "NHWC"),
            precision=jax.lax.Precision.HIGHEST)
        return jnp.maximum(y + b[None, None, None, :], 0.0)

    f1 = shared(x[..., 0:3])
    f2 = shared(x[..., 3:6])
    return jnp.transpose(f2 - f1, (0, 3, 1, 2))


if __name__ == "__main__":
    B, H, W = 2, 16, 16
    C_out = 128   # lane-dense output channels (multiple of 128)

    key = jax.random.PRNGKey(0)
    k_img, k_w, k_b = jax.random.split(key, 3)
    image = jax.random.normal(k_img, (B, 6, H, W), dtype=jnp.float32)
    w = 0.1 * jax.random.normal(k_w, (3, 3, 3, C_out), dtype=jnp.float32)
    b = 0.1 * jax.random.normal(k_b, (C_out,), dtype=jnp.float32)

    out = hgnncam_forward(image, w, b)
    out = jax.block_until_ready(out)

    ref = jax.block_until_ready(hgnncam_forward_ref(image, w, b))
    np.testing.assert_allclose(np.asarray(out), np.asarray(ref),
                               rtol=1e-3, atol=1e-3)
    print("KERNEL_OK")
</pallas_src>

<mosaic_0001>
module attributes {stable_mosaic.version = 11 : i64} {
  func.func @hgnncam_kernel(%arg0: i32, %arg1: i32, %arg2: memref<1x1x256x27xbf16, #tpu.memory_space<vmem>>, %arg3: memref<27x128xbf16, #tpu.memory_space<vmem>>, %arg4: memref<1x128xf32, #tpu.memory_space<vmem>>, %arg5: memref<1x128x128xf32, #tpu.memory_space<vmem>>) attributes {dimension_semantics = [#tpu.dimension_semantics<parallel>, #tpu.dimension_semantics<parallel>], iteration_bounds = array<i64: 2, 2>, scalar_prefetch = 0 : i64, scratch_operands = 0 : i64, tpu.core_type = #tpu.core_type<tc>, window_params = [{transform_indices = @transform_0, window_bounds = array<i64: 1, 1, 256, 27>}, {pipeline_mode = #tpu.pipeline_mode<synchronous>, transform_indices = @transform_1, window_bounds = array<i64: 27, 128>}, {pipeline_mode = #tpu.pipeline_mode<synchronous>, transform_indices = @transform_2, window_bounds = array<i64: 1, 128>}, {transform_indices = @transform_3, window_bounds = array<i64: 1, 128, 128>}]} {
    %c0 = arith.constant 0 : index
    %c0_0 = arith.constant 0 : index
    %c0_1 = arith.constant 0 : index
    %c0_2 = arith.constant 0 : index
    %0 = vector.load %arg2[%c0, %c0_0, %c0_1, %c0_2] : memref<1x1x256x27xbf16, #tpu.memory_space<vmem>>, vector<1x1x256x27xbf16>
    %1 = vector.shape_cast %0 : vector<1x1x256x27xbf16> to vector<256x27xbf16>
    %c0_3 = arith.constant 0 : index
    %c0_4 = arith.constant 0 : index
    %2 = vector.load %arg3[%c0_3, %c0_4] : memref<27x128xbf16, #tpu.memory_space<vmem>>, vector<27x128xbf16>
    %cst = arith.constant dense<0.000000e+00> : vector<256x128xf32>
    %3 = tpu.matmul %1, %2, %cst {dimension_numbers = #tpu.dot_dimension_numbers<[1], [0], [0], [1], [0, 0, 1, 1], [], []>} : vector<256x27xbf16>, vector<27x128xbf16>, vector<256x128xf32> -> vector<256x128xf32>
    %c0_5 = arith.constant 0 : index
    %c0_6 = arith.constant 0 : index
    %4 = vector.load %arg4[%c0_5, %c0_6] : memref<1x128xf32, #tpu.memory_space<vmem>>, vector<1x128xf32>
    %5 = vector.broadcast %4 : vector<1x128xf32> to vector<256x128xf32>
    %6 = arith.addf %3, %5 : vector<256x128xf32>
    %cst_7 = arith.constant 0.000000e+00 : f32
    %7 = vector.broadcast %cst_7 : f32 to vector<256x128xf32>
    %8 = arith.maximumf %6, %7 : vector<256x128xf32>
    %9 = vector.extract_strided_slice %8 {offsets = [128, 0], sizes = [128, 128], strides = [1, 1]} : vector<256x128xf32> to vector<128x128xf32>
    %10 = vector.extract_strided_slice %8 {offsets = [0, 0], sizes = [128, 128], strides = [1, 1]} : vector<256x128xf32> to vector<128x128xf32>
    %11 = arith.subf %9, %10 : vector<128x128xf32>
    %c0_8 = arith.constant 0 : index
    %c0_9 = arith.constant 0 : index
    %c0_10 = arith.constant 0 : index
    %12 = vector.load %arg5[%c0_8, %c0_9, %c0_10] : memref<1x128x128xf32, #tpu.memory_space<vmem>>, vector<1x128x128xf32>
    %13 = vector.shape_cast %12 : vector<1x128x128xf32> to vector<128x128xf32>
    %14 = vector.shape_cast %11 : vector<128x128xf32> to vector<1x128x128xf32>
    tpu.vector_store %arg5[%c0_8, %c0_9, %c0_10], %14 {strides = array<i32>} : memref<1x128x128xf32, #tpu.memory_space<vmem>>, vector<1x128x128xf32>,
    return
  }
  func.func @transform_0(%arg0: i32, %arg1: i32) -> (i32, i32, i32, i32) {
    %c0_i32 = arith.constant 0 : i32
    %c0_i32_0 = arith.constant 0 : i32
    %c0_i32_1 = arith.constant 0 : i32
    return %arg0, %arg1, %c0_i32, %c0_i32_0 : i32, i32, i32, i32
  }
  func.func @transform_1(%arg0: i32, %arg1: i32) -> (i32, i32) {
    %c0_i32 = arith.constant 0 : i32
    %c0_i32_0 = arith.constant 0 : i32
    %c0_i32_1 = arith.constant 0 : i32
    return %c0_i32, %c0_i32_0 : i32, i32
  }
  func.func @transform_2(%arg0: i32, %arg1: i32) -> (i32, i32) {
    %c0_i32 = arith.constant 0 : i32
    %c0_i32_0 = arith.constant 0 : i32
    %c0_i32_1 = arith.constant 0 : i32
    return %c0_i32, %c0_i32_0 : i32, i32
  }
  func.func @transform_3(%arg0: i32, %arg1: i32) -> (i32, i32, i32) {
    %c0_i32 = arith.constant 0 : i32
    %c0_i32_0 = arith.constant 0 : i32
    return %arg0, %arg1, %c0_i32 : i32, i32, i32
  }
}

</mosaic_0001>

<llo_original>
// kernel: tpu_custom_call.1
$region0: #{tpu_custom_call.1}
  #allocation0 [shape = 'u32[]', space=smem, size = 0x4, offset = 0x4, fixed_abs, tag = 'smem constant byte address 0x4 - core index']
  #allocation1 [shape = 'u32[144,128]{1,0:T(1,128)}', space=vmem, size = 0x12000, scoped, tag = 'internal scratch']
  %s0 = inlined_call_operand.vmem [shape: bf16[2,2,256,27], index: 0, kind: input, shape index: {}]
  %s1 = inlined_call_operand.vmem [shape: bf16[27,128], index: 1, kind: input, shape index: {}]
  %s2 = inlined_call_operand.vmem [shape: f32[1,128], index: 2, kind: input, shape index: {}]
  %s3 = inlined_call_operand.hbm [shape: f32[2,256,128], index: 3, kind: output, shape index: {}]
  %s4 = sld [smem:[#allocation0]]
  $region45: #{tpu_custom_call.1} parent=0
    _
  %s6 = ssub.s32 1, %s4
  %s7 = scalar_select 0, %s6, %s4
  $region1: #{tpu_custom_call.1} parent=0
    #allocation2 [shape = 'u8[131072]{0}', space=vmem, size = 0x20000, scoped, tag = 'output window, operand 0']
    #allocation3 [shape = 's32[2]{0}', space=sflag, size = 0x8, scoped, tag = 'scoped memory for tpu_custom_call.1']
    %8 = vsyncpa [#allocation3], 0
    %s9 = scalar_lea.sflag [#allocation3], 1
    %10 = vsyncpa %s9, 0
    loop: start=0, step=1, limit=6
    $region2: #{tpu_custom_call.1} parent=1 // loop_pre_header
      _
    $region3: #{tpu_custom_call.1} parent=1 // loop_header
      %s12 = sphi 0, %s16
      %p13 = scmp.ge.s32.totalorder %s12, 6
      %s19 = sphi 0, %s31
      %s20 = sphi 0, %s27
      %s21 = sphi 0, %s19
      %s22 = sphi 0, %s20
      %s23 = sphi 0, %s21
      %s24 = sphi 0, %s22
      %s36 = sphi 0, %s38
      %s39 = sphi 0, %s36
      %s40 = sphi 0, %s39
      %s56 = sphi 0, %s40
      %s60 = sphi 0, %s60
      %s62 = sphi 0, %s60
      %s63 = sphi 0, %s62
      %s77 = sphi 0, %s63
      %s81 = sphi 0, %s81
      %s83 = sphi 0, %s81
      %s84 = sphi 0, %s83
      %s98 = sphi 0, %s84
      %s106 = sphi 0, %s108
      %s109 = sphi 0, %s106
      %s110 = sphi 0, %s109
      %s126 = sphi 0, %s110
    $region4: #{tpu_custom_call.1} parent=1 // loop_header_branch
      %15 = sbr.rel (%p13) target = $region8
    $region5: #{tpu_custom_call.1} parent=1 // loop_body
      %s17 = ssub.s32 %s12, 1
      %s18 = ssub.s32 %s12, 2
      %s25 = sadd.s32 1, %s20
      %p26 = scmp.ge.s32.totalorder %s25, 2
      %s27 = scalar_select %p26, 0, %s25
      %s28 = sadd.s32 1, %s19
      %s29 = scalar_select %p26, %s28, %s19
      %p30 = scmp.ge.s32.totalorder %s29, 2
      %s31 = scalar_select %p30, 0, %s29
      %s32 = ssub.s32 %s19, %s31
      %s33 = ssub.s32 %s20, %s27
      %s34 = sor.u32 %s32, %s33
      %p35 = scmp.eq.s32.totalorder %s34, 0
      %s37 = sadd.s32 %s36, 1
      %s38 = scalar_select %p35, %s36, %s37
      %p41 = pneg %p35
      %p42 = scmp.eq.s32.totalorder %s12, 3
      %p43 = por %p41, %p42
      %p44 = scmp.ne.s32.totalorder %s36, %s39
      %p45 = scmp.eq.s32.totalorder %s12, 0
      %p46 = por %p44, %p45
      %p47 = scmp.ne.s32.totalorder %s36, %s39
      %p48 = scmp.eq.s32.totalorder %s17, 3
      %p49 = por %p47, %p48
      %p50 = scmp.ne.s32.totalorder %s39, %s40
      %p51 = scmp.eq.s32.totalorder %s17, 0
      %p52 = por %p50, %p51
      %p53 = scmp.ne.s32.totalorder %s39, %s40
      %p54 = scmp.eq.s32.totalorder %s18, 3
      %p55 = por %p53, %p54
      %p57 = scmp.ne.s32.totalorder %s40, %s56
      %p58 = scmp.eq.s32.totalorder %s18, 0
      %p59 = por %p57, %p58
      %s61 = sadd.s32 %s60, 1
      %p64 = scmp.eq.s32.totalorder %s12, 3
      %p65 = scmp.ne.s32.totalorder %s60, %s62
      %p66 = scmp.eq.s32.totalorder %s12, 0
      %p67 = por %p65, %p66
      %p68 = scmp.ne.s32.totalorder %s60, %s62
      %p69 = scmp.eq.s32.totalorder %s17, 3
      %p70 = por %p68, %p69
      %p71 = scmp.ne.s32.totalorder %s62, %s63
      %p72 = scmp.eq.s32.totalorder %s17, 0
      %p73 = por %p71, %p72
      %p74 = scmp.ne.s32.totalorder %s62, %s63
      %p75 = scmp.eq.s32.totalorder %s18, 3
      %p76 = por %p74, %p75
      %p78 = scmp.ne.s32.totalorder %s63, %s77
      %p79 = scmp.eq.s32.totalorder %s18, 0
      %p80 = por %p78, %p79
      %s82 = sadd.s32 %s81, 1
      %p85 = scmp.eq.s32.totalorder %s12, 3
      %p86 = scmp.ne.s32.totalorder %s81, %s83
      %p87 = scmp.eq.s32.totalorder %s12, 0
      %p88 = por %p86, %p87
      %p89 = scmp.ne.s32.totalorder %s81, %s83
      %p90 = scmp.eq.s32.totalorder %s17, 3
      %p91 = por %p89, %p90
      %p92 = scmp.ne.s32.totalorder %s83, %s84
      %p93 = scmp.eq.s32.totalorder %s17, 0
      %p94 = por %p92, %p93
      %p95 = scmp.ne.s32.totalorder %s83, %s84
      %p96 = scmp.eq.s32.totalorder %s18, 3
      %p97 = por %p95, %p96
      %p99 = scmp.ne.s32.totalorder %s84, %s98
      %p100 = scmp.eq.s32.totalorder %s18, 0
      %p101 = por %p99, %p100
      %s102 = ssub.s32 %s19, %s31
      %s103 = ssub.s32 %s20, %s27
      %s104 = sor.u32 %s102, %s103
      %p105 = scmp.eq.s32.totalorder %s104, 0
      %s107 = sadd.s32 %s106, 1
      %s108 = scalar_select %p105, %s106, %s107
      %p111 = pneg %p105
      %p112 = scmp.eq.s32.totalorder %s12, 3
      %p113 = por %p111, %p112
      %p114 = scmp.ne.s32.totalorder %s106, %s109
      %p115 = scmp.eq.s32.totalorder %s12, 0
      %p116 = por %p114, %p115
      %p117 = scmp.ne.s32.totalorder %s106, %s109
      %p118 = scmp.eq.s32.totalorder %s17, 3
      %p119 = por %p117, %p118
      %p120 = scmp.ne.s32.totalorder %s109, %s110
      %p121 = scmp.eq.s32.totalorder %s17, 0
      %p122 = por %p120, %p121
      %p123 = scmp.ne.s32.totalorder %s109, %s110
      %p124 = scmp.eq.s32.totalorder %s18, 3
      %p125 = por %p123, %p124
      %p127 = scmp.ne.s32.totalorder %s110, %s126
      %p128 = scmp.eq.s32.totalorder %s18, 0
      %p129 = por %p127, %p128
      %p130 = scmp.le.s32.totalorder 1, %s12
      %p131 = scmp.lt.s32.totalorder %s12, 5
      %p132 = pnand %p130, %p131
      %p133 = pneg %p132
      // Predicated region
      $region9: #{tpu_custom_call.1} parent=5 // pred_check
        _
      $region10: #{tpu_custom_call.1} parent=5 // pred_check_branch
        %135 = sbr.rel (%p132) target = $region12
      $region11: #{tpu_custom_call.1} parent=5 // pred_region
        %s136 = ssub.s32 %s12, 1
        // Predicated region
        $region13: #{tpu_custom_call.1} parent=11 // pred_check
          %p137 = pneg %p73
        $region14: #{tpu_custom_call.1} parent=11 // pred_check_branch
          %139 = sbr.rel (%p137) target = $region16
        $region15: #{tpu_custom_call.1} parent=11 // pred_region
          _
        $region16: #{tpu_custom_call.1} parent=11 // pred_fallthru
          _
        // Predicated region
        $region17: #{tpu_custom_call.1} parent=11 // pred_check
          %p140 = pneg %p94
        $region18: #{tpu_custom_call.1} parent=11 // pred_check_branch
          %142 = sbr.rel (%p140) target = $region20
        $region19: #{tpu_custom_call.1} parent=11 // pred_region
          _
        $region20: #{tpu_custom_call.1} parent=11 // pred_fallthru
          _
      $region12: #{tpu_custom_call.1} parent=5 // pred_fallthru
        _
      %p143 = scmp.lt.s32.totalorder %s12, 4
      // Predicated region
      $region21: #{tpu_custom_call.1} parent=5 // pred_check
        %p144 = pneg %p143
      $region22: #{tpu_custom_call.1} parent=5 // pred_check_branch
        %146 = sbr.rel (%p144) target = $region24
      $region23: #{tpu_custom_call.1} parent=5 // pred_region
        // Predicated region
        $region25: #{tpu_custom_call.1} parent=23 // pred_check
          %p147 = pneg %p46
        $region26: #{tpu_custom_call.1} parent=23 // pred_check_branch
          %149 = sbr.rel (%p147) target = $region28
        $region27: #{tpu_custom_call.1} parent=23 // pred_region
          %p150 = scmp.lt.s32.totalorder %s19, 1
          %s151 = scalar_select %p150, %s19, 1
          %p152 = scmp.lt.s32.totalorder %s20, 1
          %s153 = scalar_select %p152, %s20, 1
          %s154 = smul.addr %s153, 32
          %s155 = smul.addr %s151, 64
          %s156 = sadd.s32 %s154, %s155
          %s157 = smul.addr %s156, 4
          %s158 = scalar_lea.vmem %s0, %s157
        $region28: #{tpu_custom_call.1} parent=23 // pred_fallthru
          _
      $region24: #{tpu_custom_call.1} parent=5 // pred_fallthru
        _
      %p159 = scmp.le.s32.totalorder 1, %s12
      %p160 = scmp.lt.s32.totalorder %s12, 5
      %p161 = pnand %p159, %p160
      %p162 = pneg %p161
      // Predicated region
      $region29: #{tpu_custom_call.1} parent=5 // pred_check
        _
      $region30: #{tpu_custom_call.1} parent=5 // pred_check_branch
        %164 = sbr.rel (%p161) target = $region32
      $region31: #{tpu_custom_call.1} parent=5 // pred_region
        %s165 = ssub.s32 %s12, 1
        %p166 = scmp.lt.s32.totalorder %s21, 1
        %s167 = scalar_select %p166, %s21, 1
        %p168 = scmp.lt.s32.totalorder %s22, 1
        %s169 = scalar_select %p168, %s22, 1
        %s170 = smul.addr %s169, 32
        %s171 = smul.addr %s167, 64
        %s172 = sadd.s32 %s170, %s171
        %s173 = smul.addr %s172, 4
        %s174 = scalar_lea.vmem %s0, %s173
        %p175 = pneg %p52
        %p176 = pneg %p49
        %p177 = pneg %p73
        %p178 = pneg %p70
        %p179 = pneg %p94
        %p180 = pneg %p91
        %p181 = pneg %p122
        %p182 = pneg %p119
        %s183 = sand.u32 %s109, 1
        %s184 = scalar_lea.sflag [#allocation3], %s183
        %s185 = sand.u32 %s109, 1
        %s186 = smul.addr %s185, 128
        %s187 = scalar_lea.vmem [#allocation2], %s186
        %p188 = scmp.lt.s32.totalorder %s21, 1
        %s189 = scalar_select %p188, %s21, 1
        %p190 = scmp.lt.s32.totalorder %s22, 1
        %s191 = scalar_select %p190, %s22, 1
        %s192 = smul.addr %s191, 32
        %s193 = smul.addr %s189, 64
        %s194 = sadd.s32 %s192, %s193
        %s195 = smul.addr %s194, 4
        %s196 = scalar_lea.vmem %s0, %s195
        %s197 = smul.u32 16, %s22
        %v199 = vld [vmem:[%s196] sm:$0xf]
        %v200 = vld [vmem:[%s196 + $0x4] sm:$0xf]
        %v201 = vld [vmem:[%s196 + $0x8] sm:$0xf]
        %v202 = vld [vmem:[%s196 + $0xc] sm:$0xf]
        %v203 = vld [vmem:[%s196 + $0x10] sm:$0xf]
        %v204 = vld [vmem:[%s196 + $0x14] sm:$0xf]
        %v205 = vld [vmem:[%s196 + $0x18] sm:$0xf]
        %v206 = vld [vmem:[%s196 + $0x1c] sm:$0xf]
        %v207 = vld [vmem:[%s196 + $0x20] sm:$0xf]
        %v208 = vld [vmem:[%s196 + $0x24] sm:$0xf]
        %v209 = vld [vmem:[%s196 + $0x28] sm:$0xf]
        %v210 = vld [vmem:[%s196 + $0x2c] sm:$0xf]
        %v211 = vld [vmem:[%s196 + $0x30] sm:$0xf]
        %v212 = vld [vmem:[%s196 + $0x34] sm:$0xf]
        %v213 = vld [vmem:[%s196 + $0x38] sm:$0xf]
        %v214 = vld [vmem:[%s196 + $0x3c] sm:$0xf]
        %v215 = vld [vmem:[%s196 + $0x40] sm:$0xf]
        %v216 = vld [vmem:[%s196 + $0x44] sm:$0xf]
        %v217 = vld [vmem:[%s196 + $0x48] sm:$0xf]
        %v218 = vld [vmem:[%s196 + $0x4c] sm:$0xf]
        %v219 = vld [vmem:[%s196 + $0x50] sm:$0xf]
        %v220 = vld [vmem:[%s196 + $0x54] sm:$0xf]
        %v221 = vld [vmem:[%s196 + $0x58] sm:$0xf]
        %v222 = vld [vmem:[%s196 + $0x5c] sm:$0xf]
        %v223 = vld [vmem:[%s196 + $0x60] sm:$0xf]
        %v224 = vld [vmem:[%s196 + $0x64] sm:$0xf]
        %v225 = vld [vmem:[%s196 + $0x68] sm:$0xf]
        %v226 = vld [vmem:[%s196 + $0x6c] sm:$0xf]
        %v227 = vld [vmem:[%s196 + $0x70] sm:$0xf]
        %v228 = vld [vmem:[%s196 + $0x74] sm:$0xf]
        %v229 = vld [vmem:[%s196 + $0x78] sm:$0xf]
        %v230 = vld [vmem:[%s196 + $0x7c] sm:$0xf]
        %v231 = vld [vmem:[%s1] sm:$0xf]
        %v232 = vld [vmem:[%s1 + $0x4] sm:$0xf]
        %v233 = vld [vmem:[%s1 + $0x8] sm:$0xf]
        %v234 = vld [vmem:[%s1 + $0xc] sm:$0x3]
        %v235 = vld [vmem:[%s2] sm:$0x1]
        %v237 = vlaneseq
        %v238 = vshrl.u32 %v237, 7
        %v239 = vsub.s32 0, %v238
        %v240 = vrot.slane %v235, %v239
        %v274 = vunpack.c.l.b16 %v199
        %v275 = vunpack.c.l.b16 %v200
        %v276 = vunpack.c.l.b16 %v201
        %v277 = vunpack.c.l.b16 %v202
        %v278 = vunpack.c.l.b16 %v203
        %v279 = vunpack.c.l.b16 %v204
        %v280 = vunpack.c.l.b16 %v205
        %v281 = vunpack.c.l.b16 %v206
        %v282 = vunpack.c.l.b16 %v207
        %v283 = vunpack.c.l.b16 %v208
        %v284 = vunpack.c.l.b16 %v209
        %v285 = vunpack.c.l.b16 %v210
        %v286 = vunpack.c.l.b16 %v211
        %v287 = vunpack.c.l.b16 %v212
        %v288 = vunpack.c.l.b16 %v213
        %v289 = vunpack.c.l.b16 %v214
        %v290 = vunpack.c.l.b16 %v215
        %v291 = vunpack.c.l.b16 %v216
        %v292 = vunpack.c.l.b16 %v217
        %v293 = vunpack.c.l.b16 %v218
        %v294 = vunpack.c.l.b16 %v219
        %v295 = vunpack.c.l.b16 %v220
        %v296 = vunpack.c.l.b16 %v221
        %v297 = vunpack.c.l.b16 %v222
        %v298 = vunpack.c.l.b16 %v223
        %v299 = vunpack.c.l.b16 %v224
        %v300 = vunpack.c.l.b16 %v225
        %v301 = vunpack.c.l.b16 %v226
        %v302 = vunpack.c.l.b16 %v227
        %v303 = vunpack.c.l.b16 %v228
        %v304 = vunpack.c.l.b16 %v229
        %v305 = vunpack.c.l.b16 %v230
        %v306 = vpack.c.b16 %v275, %v274
        %v307 = vpack.c.b16 %v277, %v276
        %v308 = vpack.c.b16 %v279, %v278
        %v309 = vpack.c.b16 %v281, %v280
        %v310 = vpack.c.b16 %v283, %v282
        %v311 = vpack.c.b16 %v285, %v284
        %v312 = vpack.c.b16 %v287, %v286
        %v313 = vpack.c.b16 %v289, %v288
        %v314 = vpack.c.b16 %v291, %v290
        %v315 = vpack.c.b16 %v293, %v292
        %v316 = vpack.c.b16 %v295, %v294
        %v317 = vpack.c.b16 %v297, %v296
        %v318 = vpack.c.b16 %v299, %v298
        %v319 = vpack.c.b16 %v301, %v300
        %v320 = vpack.c.b16 %v303, %v302
        %v321 = vpack.c.b16 %v305, %v304
        %v326 = vunpack.c.l.b16 %v231
        %v327 = vunpack.c.l.b16 %v232
        %v328 = vunpack.c.l.b16 %v233
        %v329 = vunpack.c.l.b16 %v234
        %v330 = vpack.c.b16 %v327, %v326
        %v331 = vpack.c.b16 %v329, %v328
        %vm333 = vcmask 220160
        %v335 = vsel %vm333, %v306, 0
        %v338 = vsel %vm333, %v307, 0
        %v341 = vsel %vm333, %v308, 0
        %v344 = vsel %vm333, %v309, 0
        %v347 = vsel %vm333, %v310, 0
        %v350 = vsel %vm333, %v311, 0
        %v353 = vsel %vm333, %v312, 0
        %v356 = vsel %vm333, %v313, 0
        %v359 = vsel %vm333, %v314, 0
        %v362 = vsel %vm333, %v315, 0
        %v365 = vsel %vm333, %v316, 0
        %v368 = vsel %vm333, %v317, 0
        %v371 = vsel %vm333, %v318, 0
        %v374 = vsel %vm333, %v319, 0
        %v377 = vsel %vm333, %v320, 0
        %v380 = vsel %vm333, %v321, 0
        %vm382 = vcmask 1044480
        %vm383 = vcmask 1045504
        %v384 = vsel %vm382, 4294967295, 65535
        %v385 = vsel %vm383, %v384, 0
        %v387 = vand.u32 %v331, %v385
        %389 = vmatprep.subr.bf16.mxu0 0
        %390 = vmatpush1.bf16.msra.mxu0 %v330
        %391 = vmatprep.subr.bf16.mxu0 0
        %392 = vmatpush1.bf16.msra.mxu0 %v387
        %393 = vmatprep.subr.bf16.mxu0 0
        %394 = vmatpush1.bf16.msra.mxu0 0
        %395 = vmatprep.subr.bf16.mxu0 0
        %396 = vmatpush1.bf16.msra.mxu0 0
        %397 = vmatprep.subr.bf16.mxu0 0
        %398 = vmatpush1.bf16.msra.mxu0 0
        %399 = vmatprep.subr.bf16.mxu0 0
        %400 = vmatpush1.bf16.msra.mxu0 0
        %401 = vmatprep.subr.bf16.mxu0 0
        %402 = vmatpush1.bf16.msra.mxu0 0
        %403 = vmatprep.subr.bf16.mxu0 0
        %404 = vmatpush1.bf16.msra.mxu0 0
        %405 = vmatprep.subr.bf16.mxu0 0
        %406 = vmatpush1.bf16.msra.mxu0 0
        %407 = vmatprep.subr.bf16.mxu0 0
        %408 = vmatpush1.bf16.msra.mxu0 0
        %409 = vmatprep.subr.bf16.mxu0 0
        %410 = vmatpush1.bf16.msra.mxu0 0
        %411 = vmatprep.subr.bf16.mxu0 0
        %412 = vmatpush1.bf16.msra.mxu0 0
        %413 = vmatprep.subr.bf16.mxu0 0
        %414 = vmatpush1.bf16.msra.mxu0 0
        %415 = vmatprep.subr.bf16.mxu0 0
        %416 = vmatpush1.bf16.msra.mxu0 0
        %417 = vmatprep.subr.bf16.mxu0 0
        %418 = vmatpush1.bf16.msra.mxu0 0
        %419 = vmatprep.subr.bf16.mxu0 0
        %420 = vmatpush1.bf16.msra.mxu0 0
        %421 = vmatprep.mubr.bf16.mxu0 0
        %422 = vmatmul.mubr.bf16.gmra.mrb[0].mxu0 %v335
        %v423 = vpop.f32.mrb[0].mxu0
        %v424 = vadd.f32 %v240, %v423
        %v425 = vpop.f32.mrb[0].mxu0
        %v426 = vpop.f32.mrb[0].mxu0
        %v427 = vadd.f32 %v240, %v426
        %v428 = vpop.f32.mrb[0].mxu0
        %429 = vmatprep.mubr.bf16.mxu0 0
        %430 = vmatmul.mubr.bf16.gmra.mrb[0].mxu0 %v338
        %v431 = vpop.f32.mrb[0].mxu0
        %v432 = vadd.f32 %v240, %v431
        %v433 = vpop.f32.mrb[0].mxu0
        %v434 = vpop.f32.mrb[0].mxu0
        %v435 = vadd.f32 %v240, %v434
        %v436 = vpop.f32.mrb[0].mxu0
        %437 = vmatprep.mubr.bf16.mxu0 0
        %438 = vmatmul.mubr.bf16.gmra.mrb[0].mxu0 %v341
        %v439 = vpop.f32.mrb[0].mxu0
        %v440 = vadd.f32 %v240, %v439
        %v441 = vpop.f32.mrb[0].mxu0
        %v442 = vpop.f32.mrb[0].mxu0
        %v443 = vadd.f32 %v240, %v442
        %v444 = vpop.f32.mrb[0].mxu0
        %445 = vmatprep.mubr.bf16.mxu0 0
        %446 = vmatmul.mubr.bf16.gmra.mrb[0].mxu0 %v344
        %v447 = vpop.f32.mrb[0].mxu0
        %v448 = vadd.f32 %v240, %v447
        %v449 = vpop.f32.mrb[0].mxu0
        %v450 = vpop.f32.mrb[0].mxu0
        %v451 = vadd.f32 %v240, %v450
        %v452 = vpop.f32.mrb[0].mxu0
        %453 = vmatprep.mubr.bf16.mxu0 0
        %454 = vmatmul.mubr.bf16.gmra.mrb[0].mxu0 %v347
        %v455 = vpop.f32.mrb[0].mxu0
        %v456 = vadd.f32 %v240, %v455
        %v457 = vpop.f32.mrb[0].mxu0
        %v458 = vpop.f32.mrb[0].mxu0
        %v459 = vadd.f32 %v240, %v458
        %v460 = vpop.f32.mrb[0].mxu0
        %461 = vmatprep.mubr.bf16.mxu0 0
        %462 = vmatmul.mubr.bf16.gmra.mrb[0].mxu0 %v350
        %v463 = vpop.f32.mrb[0].mxu0
        %v464 = vadd.f32 %v240, %v463
        %v465 = vpop.f32.mrb[0].mxu0
        %v466 = vpop.f32.mrb[0].mxu0
        %v467 = vadd.f32 %v240, %v466
        %v468 = vpop.f32.mrb[0].mxu0
        %469 = vmatprep.mubr.bf16.mxu0 0
        %470 = vmatmul.mubr.bf16.gmra.mrb[0].mxu0 %v353
        %v471 = vpop.f32.mrb[0].mxu0
        %v472 = vadd.f32 %v240, %v471
        %v473 = vpop.f32.mrb[0].mxu0
        %v474 = vpop.f32.mrb[0].mxu0
        %v475 = vadd.f32 %v240, %v474
        %v476 = vpop.f32.mrb[0].mxu0
        %477 = vmatprep.mubr.bf16.mxu0 0
        %478 = vmatmul.mubr.bf16.gmra.mrb[0].mxu0 %v356
        %v479 = vpop.f32.mrb[0].mxu0
        %v480 = vadd.f32 %v240, %v479
        %v481 = vpop.f32.mrb[0].mxu0
        %v482 = vpop.f32.mrb[0].mxu0
        %v483 = vadd.f32 %v240, %v482
        %v484 = vpop.f32.mrb[0].mxu0
        %485 = vmatprep.mubr.bf16.mxu0 0
        %486 = vmatmul.mubr.bf16.gmra.mrb[0].mxu0 %v359
        %v487 = vpop.f32.mrb[0].mxu0
        %v488 = vadd.f32 %v240, %v487
        %v489 = vpop.f32.mrb[0].mxu0
        %v490 = vpop.f32.mrb[0].mxu0
        %v491 = vadd.f32 %v240, %v490
        %v492 = vpop.f32.mrb[0].mxu0
        %493 = vmatprep.mubr.bf16.mxu0 0
        %494 = vmatmul.mubr.bf16.gmra.mrb[0].mxu0 %v362
        %v495 = vpop.f32.mrb[0].mxu0
        %v496 = vadd.f32 %v240, %v495
        %v497 = vpop.f32.mrb[0].mxu0
        %v498 = vpop.f32.mrb[0].mxu0
        %v499 = vadd.f32 %v240, %v498
        %v500 = vpop.f32.mrb[0].mxu0
        %501 = vmatprep.mubr.bf16.mxu0 0
        %502 = vmatmul.mubr.bf16.gmra.mrb[0].mxu0 %v365
        %v503 = vpop.f32.mrb[0].mxu0
        %v504 = vadd.f32 %v240, %v503
        %v505 = vpop.f32.mrb[0].mxu0
        %v506 = vpop.f32.mrb[0].mxu0
        %v507 = vadd.f32 %v240, %v506
        %v508 = vpop.f32.mrb[0].mxu0
        %509 = vmatprep.mubr.bf16.mxu0 0
        %510 = vmatmul.mubr.bf16.gmra.mrb[0].mxu0 %v368
        %v511 = vpop.f32.mrb[0].mxu0
        %v512 = vadd.f32 %v240, %v511
        %v513 = vpop.f32.mrb[0].mxu0
        %v514 = vpop.f32.mrb[0].mxu0
        %v515 = vadd.f32 %v240, %v514
        %v516 = vpop.f32.mrb[0].mxu0
        %517 = vmatprep.mubr.bf16.mxu0 0
        %518 = vmatmul.mubr.bf16.gmra.mrb[0].mxu0 %v371
        %v519 = vpop.f32.mrb[0].mxu0
        %v520 = vadd.f32 %v240, %v519
        %v521 = vpop.f32.mrb[0].mxu0
        %v522 = vpop.f32.mrb[0].mxu0
        %v523 = vadd.f32 %v240, %v522
        %v524 = vpop.f32.mrb[0].mxu0
        %525 = vmatprep.mubr.bf16.mxu0 0
        %526 = vmatmul.mubr.bf16.gmra.mrb[0].mxu0 %v374
        %v527 = vpop.f32.mrb[0].mxu0
        %v528 = vadd.f32 %v240, %v527
        %v529 = vpop.f32.mrb[0].mxu0
        %v530 = vpop.f32.mrb[0].mxu0
        %v531 = vadd.f32 %v240, %v530
        %v532 = vpop.f32.mrb[0].mxu0
        %533 = vmatprep.mubr.bf16.mxu0 0
        %534 = vmatmul.mubr.bf16.gmra.mrb[0].mxu0 %v377
        %v535 = vpop.f32.mrb[0].mxu0
        %v536 = vadd.f32 %v240, %v535
        %v537 = vpop.f32.mrb[0].mxu0
        %v538 = vpop.f32.mrb[0].mxu0
        %v539 = vadd.f32 %v240, %v538
        %v540 = vpop.f32.mrb[0].mxu0
        %541 = vmatprep.mubr.bf16.mxu0 0
        %542 = vmatmul.mubr.bf16.gmra.mrb[0].mxu0 %v380
        %v543 = vpop.f32.mrb[0].mxu0
        %v544 = vadd.f32 %v240, %v543
        %v545 = vpop.f32.mrb[0].mxu0
        %v546 = vpop.f32.mrb[0].mxu0
        %v547 = vadd.f32 %v240, %v546
        %v548 = vpop.f32.mrb[0].mxu0
        %549 = vdwg.mxu0
        %v550 = vmax.f32 %v424, 0.0
        %v551 = vmax.f32 %v427, 0.0
        %v552 = vmax.f32 %v432, 0.0
        %v553 = vmax.f32 %v435, 0.0
        %v554 = vmax.f32 %v440, 0.0
        %v555 = vmax.f32 %v443, 0.0
        %v556 = vmax.f32 %v448, 0.0
        %v557 = vmax.f32 %v451, 0.0
        %v558 = vmax.f32 %v456, 0.0
        %v559 = vmax.f32 %v459, 0.0
        %v560 = vmax.f32 %v464, 0.0
        %v561 = vmax.f32 %v467, 0.0
        %v562 = vmax.f32 %v472, 0.0
        %v563 = vmax.f32 %v475, 0.0
        %v564 = vmax.f32 %v480, 0.0
        %v565 = vmax.f32 %v483, 0.0
        %v566 = vmax.f32 %v488, 0.0
        %v567 = vmax.f32 %v491, 0.0
        %v568 = vmax.f32 %v496, 0.0
        %v569 = vmax.f32 %v499, 0.0
        %v570 = vmax.f32 %v504, 0.0
        %v571 = vmax.f32 %v507, 0.0
        %v572 = vmax.f32 %v512, 0.0
        %v573 = vmax.f32 %v515, 0.0
        %v574 = vmax.f32 %v520, 0.0
        %v575 = vmax.f32 %v523, 0.0
        %v576 = vmax.f32 %v528, 0.0
        %v577 = vmax.f32 %v531, 0.0
        %v578 = vmax.f32 %v536, 0.0
        %v579 = vmax.f32 %v539, 0.0
        %v580 = vmax.f32 %v544, 0.0
        %v581 = vmax.f32 %v547, 0.0
        %v582 = vsub.f32 %v566, %v550
        %v583 = vsub.f32 %v567, %v551
        %v584 = vsub.f32 %v568, %v552
        %v585 = vsub.f32 %v569, %v553
        %v586 = vsub.f32 %v570, %v554
        %v587 = vsub.f32 %v571, %v555
        %v588 = vsub.f32 %v572, %v556
        %v589 = vsub.f32 %v573, %v557
        %v590 = vsub.f32 %v574, %v558
        %v591 = vsub.f32 %v575, %v559
        %v592 = vsub.f32 %v576, %v560
        %v593 = vsub.f32 %v577, %v561
        %v594 = vsub.f32 %v578, %v562
        %v595 = vsub.f32 %v579, %v563
        %v596 = vsub.f32 %v580, %v564
        %v597 = vsub.f32 %v581, %v565
        %598 = vst [vmem:[%s187] sm:$0xff] %v582
        %599 = vst [vmem:[%s187 + $0x8] sm:$0xff] %v583
        %600 = vst [vmem:[%s187 + $0x10] sm:$0xff] %v584
        %601 = vst [vmem:[%s187 + $0x18] sm:$0xff] %v585
        %602 = vst [vmem:[%s187 + $0x20] sm:$0xff] %v586
        %603 = vst [vmem:[%s187 + $0x28] sm:$0xff] %v587
        %604 = vst [vmem:[%s187 + $0x30] sm:$0xff] %v588
        %605 = vst [vmem:[%s187 + $0x38] sm:$0xff] %v589
        %606 = vst [vmem:[%s187 + $0x40] sm:$0xff] %v590
        %607 = vst [vmem:[%s187 + $0x48] sm:$0xff] %v591
        %608 = vst [vmem:[%s187 + $0x50] sm:$0xff] %v592
        %609 = vst [vmem:[%s187 + $0x58] sm:$0xff] %v593
        %610 = vst [vmem:[%s187 + $0x60] sm:$0xff] %v594
        %611 = vst [vmem:[%s187 + $0x68] sm:$0xff] %v595
        %612 = vst [vmem:[%s187 + $0x70] sm:$0xff] %v596
        %613 = vst [vmem:[%s187 + $0x78] sm:$0xff] %v597
        %s614 = sand.u32 %s109, 1
        %s615 = scalar_lea.sflag [#allocation3], %s614
        %s616 = sand.u32 %s109, 1
        %s617 = smul.addr %s616, 128
        %s618 = scalar_lea.vmem [#allocation2], %s617
        // Predicated region
        $region33: #{tpu_custom_call.1} parent=31 // pred_check
          %p619 = pneg %p119
        $region34: #{tpu_custom_call.1} parent=31 // pred_check_branch
          %621 = sbr.rel (%p619) target = $region36
        $region35: #{tpu_custom_call.1} parent=31 // pred_region
          %s622 = smul.u32 16, %s22
          %s624 = ssub.s32 2048, 2048
          %625 = vsyncadd %s615, %s624
          %s626 = smul.addr %s21, 32
          %s627 = sadd.s32 %s622, %s626
          %s628 = smul.addr %s627, 128
          %s629 = scalar_lea.hbm %s3, %s628
          %s630 = sshll.u32 %s618, 4
          %s631 = int_to_ptr.vmem [resolvable:$true] %s630
          %636 = dma.vmem_to_hbm [thread:$0]  %s631, 2048, %s629, %s615, 128, 128, 8
        $region36: #{tpu_custom_call.1} parent=31 // pred_fallthru
          _
      $region32: #{tpu_custom_call.1} parent=5 // pred_fallthru
        _
      %p637 = scmp.le.s32.totalorder 2, %s12
      // Predicated region
      $region37: #{tpu_custom_call.1} parent=5 // pred_check
        %p638 = pneg %p637
      $region38: #{tpu_custom_call.1} parent=5 // pred_check_branch
        %640 = sbr.rel (%p638) target = $region40
      $region39: #{tpu_custom_call.1} parent=5 // pred_region
        %s641 = ssub.s32 %s12, 2
        // Predicated region
        $region41: #{tpu_custom_call.1} parent=39 // pred_check
          %p642 = pneg %p125
        $region42: #{tpu_custom_call.1} parent=39 // pred_check_branch
          %644 = sbr.rel (%p642) target = $region44
        $region43: #{tpu_custom_call.1} parent=39 // pred_region
          %s645 = sand.u32 %s110, 1
          %s646 = scalar_lea.sflag [#allocation3], %s645
          %s647 = sand.u32 %s110, 1
          %s648 = smul.addr %s647, 128
          %s649 = scalar_lea.vmem [#allocation2], %s648
          %650 = dma.done %s646, 2048
        $region44: #{tpu_custom_call.1} parent=39 // pred_fallthru
          _
      $region40: #{tpu_custom_call.1} parent=5 // pred_fallthru
        _
    $region6: #{tpu_custom_call.1} parent=1 // loop_footer
      %s16 = sadd.s32 1, %s12
    $region7: #{tpu_custom_call.1} parent=1 // loop_footer_branch
      %11 = sbr.rel target = $region3
    $region8: #{tpu_custom_call.1} parent=1 // loop_exit
      _
    %651 = vsyncpa [#allocation3], 1
    %s652 = scalar_lea.sflag [#allocation3], 1
    %653 = vsyncpa %s652, 1

</llo_original>
